<compile_context>
chip_gen: v7x
topology: tpu7x:2x2x1
jax: 0.10.0
libtpu: 0.0.40
codegen_flags: <defaults>
</compile_context>

<pallas_src>
import functools

import jax
import jax.numpy as jnp
from jax.experimental import pallas as pl
from jax.experimental.pallas import tpu as pltpu


def _rmsnorm_kernel(x_ref, w_ref, o_ref, *, eps, inv_dim):
    # Hot path: square, lane-sum (XLU), rsqrt (EUP), scale, cast, weight mul.
    x_f32 = x_ref[...].astype(jnp.float32)                              # x.float()
    mean_sq = jnp.sum(x_f32 * x_f32, axis=-1, keepdims=True) * inv_dim  # .pow(2).mean(-1)
    inv_rms = jax.lax.rsqrt(mean_sq + eps)                              # rsqrt(. + eps)
    normed = (x_f32 * inv_rms).astype(x_ref.dtype)                      # .type_as(x)
    # w_ref already carries the dtype of the final multiply (pre-cast in the
    # wrapper), so this never re-promotes the whole (tm, dim) normed tile.
    o_ref[...] = (normed * w_ref[...]).astype(o_ref.dtype)              # * self.weight


def _vmem_capacity_bytes():
    """Physical VMEM per TensorCore; conservative 64 MiB (v7x) fallback."""
    try:
        cap = getattr(pltpu.get_tpu_info(), "vmem_capacity_bytes", None)
        if cap:
            return int(cap)
    except Exception:
        pass
    return 64 * 1024 * 1024


def _pick_block_rows(rows, dim, in_dtype, out_dtype, budget, max_block_rows):
    """Largest row tile whose per-grid-step working set fits `budget` bytes.

    Working set per step ~= double-buffered (in + out) IO blocks plus ~2
    f32-sized intermediates (x_f32, normed) that Mosaic materializes for the
    (tm, dim) block.
    """
    in_b = jnp.dtype(in_dtype).itemsize
    out_b = jnp.dtype(out_dtype).itemsize
    per_row = 2 * dim * (in_b + out_b) + 2 * dim * 4
    # For an extremely large `dim` even 8 rows may exceed the budget; fall back
    # to the minimum legal sublane tile and rely on the vmem_limit headroom.
    tm = max(budget // per_row, 8)
    if max_block_rows is not None:
        tm = min(tm, int(max_block_rows))
    # Guarantee >= 2 grid steps whenever the rows are splittable so that the
    # "parallel" axis shards across both TensorCores on v7x (harmless ~0.35 us
    # of extra per-step overhead on single-TC v5e/v6e).
    if rows > 8:
        two_step = ((rows + 1) // 2 + 7) // 8 * 8   # ceil(rows/2) rounded up to 8
        tm = min(tm, two_step)
    tm = int(min(tm, rows))
    if tm >= rows:
        return rows                      # full extent — always a legal block shape
    return max(8, (tm // 8) * 8)         # multiple of 8 sublanes when tiling


def rmsnorm(x, weight, eps=1e-6, *, out_dtype=None, max_block_rows=None):
    """RMSNorm over the last axis of `x` with per-feature `weight`.

    out_dtype=None (default, recommended): output in x.dtype (bandwidth mode).
    For strict torch promotion semantics pass
    out_dtype=jnp.promote_types(x.dtype, weight.dtype).
    """
    orig_shape = x.shape
    dim = orig_shape[-1]
    assert weight.shape == (dim,), (weight.shape, dim)

    rows = 1
    for s in orig_shape[:-1]:
        rows *= s
    x2d = x.reshape(rows, dim)

    if out_dtype is None:
        out_dtype = x.dtype              # bandwidth mode: no promoted f32 writeback
    out_dtype = jnp.dtype(out_dtype)

    # Dtype the final `normed * weight` multiply runs in.  Torch runs it in
    # promote(x.dtype, weight.dtype); bandwidth mode runs it in x.dtype.
    # Pre-casting the tiny (dim,) weight here keeps that choice out of the
    # per-tile hot loop.
    mul_dtype = jnp.promote_types(x.dtype, out_dtype)
    w2d = weight.astype(mul_dtype).reshape(1, dim)

    vmem_cap = _vmem_capacity_bytes()                    # 64 MiB v7x, 128 MiB v5e/v6e
    budget = min(vmem_cap // 2, 48 * 1024 * 1024)        # per-step working-set budget
    vmem_limit = min(vmem_cap * 3 // 4, 96 * 1024 * 1024)

    tm = _pick_block_rows(rows, dim, x.dtype, out_dtype, budget, max_block_rows)
    grid = (pl.cdiv(rows, tm),)          # ragged last block: Pallas masks read+write

    out = pl.pallas_call(
        functools.partial(_rmsnorm_kernel, eps=float(eps), inv_dim=1.0 / float(dim)),
        out_shape=jax.ShapeDtypeStruct((rows, dim), out_dtype),
        grid_spec=pltpu.PrefetchScalarGridSpec(
            num_scalar_prefetch=0,
            grid=grid,
            in_specs=[
                pl.BlockSpec((tm, dim), lambda i: (i, 0)),   # x row tile (streamed)
                # Constant block index -> weight stays VMEM-resident across the
                # grid instead of being re-DMA'd every step.
                pl.BlockSpec((1, dim), lambda i: (0, 0)),
            ],
            out_specs=pl.BlockSpec((tm, dim), lambda i: (i, 0)),
        ),
        compiler_params=pltpu.CompilerParams(
            # "parallel": the row-tile axis shards across the 2 TensorCores on
            # v7x (no effect on single-TC v5e/v6e).  If a Mosaic dump shows it
            # not sharding, switch to pltpu.CORE_PARALLEL on this axis.
            dimension_semantics=("parallel",),
            # Explicit limit: v5e's scoped-VMEM default is only 16 MiB; cap at
            # 3/4 of physical VMEM (48 MiB on v7x) to leave compiler headroom.
            vmem_limit_bytes=int(vmem_limit),
        ),
    )(x2d, w2d)

    return out.reshape(orig_shape)


def _reference_rmsnorm(x, weight, eps=1e-6):
    """Pure-JAX reference with exact torch promotion semantics."""
    x_f32 = x.astype(jnp.float32)
    inv = jax.lax.rsqrt(jnp.mean(x_f32 * x_f32, axis=-1, keepdims=True) + eps)
    return (x_f32 * inv).astype(x.dtype) * weight


if __name__ == "__main__":
    key = jax.random.PRNGKey(0)
    batch, seq, hidden = 2, 8, 128

    # --- Test 1: bf16 activations, f32 weight (module default: ones) --------
    x = jax.random.normal(key, (batch, seq, hidden), dtype=jnp.float32).astype(jnp.bfloat16)
    weight = jnp.ones((hidden,), dtype=jnp.float32)
    y_ref = _reference_rmsnorm(x, weight, eps=1e-6)           # torch-promoted f32 values

    # (a) default bandwidth mode: output in x.dtype
    y = jax.block_until_ready(rmsnorm(x, weight, eps=1e-6))
    assert y.shape == x.shape and y.dtype == jnp.bfloat16
    assert jnp.allclose(y.astype(jnp.float32), y_ref.astype(jnp.float32), atol=2e-2, rtol=2e-2)

    # (b) strict torch-promotion semantics on request
    y_strict = jax.block_until_ready(
        rmsnorm(x, weight, eps=1e-6, out_dtype=jnp.promote_types(x.dtype, weight.dtype)))
    assert y_strict.dtype == jnp.promote_types(x.dtype, weight.dtype)
    assert jnp.allclose(y_strict, y_ref, atol=1e-3, rtol=1e-3)

    # --- Test 2: ragged grid (rows not a multiple of the tile), real weight --
    k1, k2 = jax.random.split(key)
    x2 = jax.random.normal(k1, (300, hidden), dtype=jnp.float32).astype(jnp.bfloat16)
    w2 = 1.0 + 0.1 * jax.random.normal(k2, (hidden,), dtype=jnp.float32)
    y2 = jax.block_until_ready(rmsnorm(x2, w2, eps=1e-6, max_block_rows=128))
    y2_ref = _reference_rmsnorm(x2, w2, eps=1e-6)
    assert y2.shape == (300, hidden)
    assert jnp.allclose(y2.astype(jnp.float32), y2_ref.astype(jnp.float32), atol=2e-2, rtol=2e-2)

    # --- Test 3: pure-f32 path (dtypes identical -> identical to torch) ------
    x3 = jax.random.normal(k2, (16, hidden), dtype=jnp.float32)
    w3 = jnp.ones((hidden,), dtype=jnp.float32)
    y3 = jax.block_until_ready(rmsnorm(x3, w3, eps=1e-6))     # also exercises the 2-step grid
    y3_ref = _reference_rmsnorm(x3, w3, eps=1e-6)
    assert y3.dtype == jnp.float32
    assert jnp.allclose(y3, y3_ref, atol=1e-5, rtol=1e-5)

    print("KERNEL_OK")
</pallas_src>

<mosaic_0001>
module attributes {stable_mosaic.version = 11 : i64} {
  func.func @_rmsnorm_kernel(%arg0: i32, %arg1: memref<8x128xbf16, #tpu.memory_space<vmem>>, %arg2: memref<1x128xbf16, #tpu.memory_space<vmem>>, %arg3: memref<8x128xbf16, #tpu.memory_space<vmem>>) attributes {dimension_semantics = [#tpu.dimension_semantics<parallel>], iteration_bounds = array<i64: 2>, scalar_prefetch = 0 : i64, scratch_operands = 0 : i64, tpu.core_type = #tpu.core_type<tc>, window_params = [{transform_indices = @transform_0, window_bounds = array<i64: 8, 128>}, {pipeline_mode = #tpu.pipeline_mode<synchronous>, transform_indices = @transform_1, window_bounds = array<i64: 1, 128>}, {transform_indices = @transform_2, window_bounds = array<i64: 8, 128>}]} {
    %c0 = arith.constant 0 : index
    %c0_0 = arith.constant 0 : index
    %0 = vector.load %arg1[%c0, %c0_0] : memref<8x128xbf16, #tpu.memory_space<vmem>>, vector<8x128xbf16>
    %1 = arith.extf %0 : vector<8x128xbf16> to vector<8x128xf32>
    %2 = arith.mulf %1, %1 : vector<8x128xf32>
    %cst = arith.constant dense<0.000000e+00> : vector<8xf32>
    %3 = vector.multi_reduction <add>, %2, %cst [1] : vector<8x128xf32> to vector<8xf32>
    %4 = vector.shape_cast %3 : vector<8xf32> to vector<8x1xf32>
    %cst_1 = arith.constant 7.812500e-03 : f32
    %5 = vector.broadcast %cst_1 : f32 to vector<8x1xf32>
    %6 = arith.mulf %4, %5 : vector<8x1xf32>
    %cst_2 = arith.constant 9.99999997E-7 : f32
    %7 = vector.broadcast %cst_2 : f32 to vector<8x1xf32>
    %8 = arith.addf %6, %7 : vector<8x1xf32>
    %9 = math.rsqrt %8 : vector<8x1xf32>
    %10 = vector.broadcast %9 : vector<8x1xf32> to vector<8x128xf32>
    %11 = arith.mulf %1, %10 : vector<8x128xf32>
    %12 = arith.truncf %11 : vector<8x128xf32> to vector<8x128xbf16>
    %c0_3 = arith.constant 0 : index
    %c0_4 = arith.constant 0 : index
    %13 = vector.load %arg2[%c0_3, %c0_4] : memref<1x128xbf16, #tpu.memory_space<vmem>>, vector<1x128xbf16>
    %14 = vector.broadcast %13 : vector<1x128xbf16> to vector<8x128xbf16>
    %15 = arith.mulf %12, %14 : vector<8x128xbf16>
    %c0_5 = arith.constant 0 : index
    %c0_6 = arith.constant 0 : index
    %16 = vector.load %arg3[%c0_5, %c0_6] : memref<8x128xbf16, #tpu.memory_space<vmem>>, vector<8x128xbf16>
    tpu.vector_store %arg3[%c0_5, %c0_6], %15 {strides = array<i32>} : memref<8x128xbf16, #tpu.memory_space<vmem>>, vector<8x128xbf16>,
    return
  }
  func.func @transform_0(%arg0: i32) -> (i32, i32) {
    %c0_i32 = arith.constant 0 : i32
    %c0_i32_0 = arith.constant 0 : i32
    return %arg0, %c0_i32 : i32, i32
  }
  func.func @transform_1(%arg0: i32) -> (i32, i32) {
    %c0_i32 = arith.constant 0 : i32
    %c0_i32_0 = arith.constant 0 : i32
    %c0_i32_1 = arith.constant 0 : i32
    return %c0_i32, %c0_i32_0 : i32, i32
  }
  func.func @transform_2(%arg0: i32) -> (i32, i32) {
    %c0_i32 = arith.constant 0 : i32
    %c0_i32_0 = arith.constant 0 : i32
    return %arg0, %c0_i32 : i32, i32
  }
}

</mosaic_0001>

<llo_original>
// kernel: tpu_custom_call.1
$region0: #{tpu_custom_call.1}
  #allocation0 [shape = 'u32[]', space=smem, size = 0x4, offset = 0x4, fixed_abs, tag = 'smem constant byte address 0x4 - core index']
  #allocation1 [shape = 'u32[144,128]{1,0:T(1,128)}', space=vmem, size = 0x12000, scoped, tag = 'internal scratch']
  %s0 = inlined_call_operand.hbm [shape: bf16[16,128], index: 0, kind: input, shape index: {}]
  %s1 = inlined_call_operand.vmem [shape: bf16[1,128], index: 1, kind: input, shape index: {}]
  %s2 = inlined_call_operand.hbm [shape: bf16[16,128], index: 2, kind: output, shape index: {}]
  %s3 = sld [smem:[#allocation0]]
  $region45: #{tpu_custom_call.1} parent=0
    _
  %s5 = ssub.s32 1, %s3
  %s6 = scalar_select 0, %s5, %s3
  $region1: #{tpu_custom_call.1} parent=0
    #allocation2 [shape = 'u8[4096]{0}', space=vmem, size = 0x1000, scoped, tag = 'input window, operand 0']
    #allocation3 [shape = 's32[2]{0}', space=sflag, size = 0x8, scoped, tag = 'scoped memory for tpu_custom_call.1']
    #allocation4 [shape = 's32[2]{0}', space=sflag, size = 0x8, scoped, tag = 'scoped memory for tpu_custom_call.1']
    #allocation5 [shape = 'u8[4096]{0}', space=vmem, size = 0x1000, scoped, tag = 'output window, operand 0']
    %7 = vsyncpa [#allocation3], 0
    %s8 = scalar_lea.sflag [#allocation3], 1
    %9 = vsyncpa %s8, 0
    %10 = vsyncpa [#allocation4], 0
    %s11 = scalar_lea.sflag [#allocation4], 1
    %12 = vsyncpa %s11, 0
    loop: start=0, step=1, limit=4
    $region2: #{tpu_custom_call.1} parent=1 // loop_pre_header
      _
    $region3: #{tpu_custom_call.1} parent=1 // loop_header
      %s14 = sphi 0, %s18
      %p15 = scmp.ge.s32.totalorder %s14, 4
      %s24 = sphi 0, %s26
      %s27 = sphi 0, %s24
      %s28 = sphi 0, %s27
      %s44 = sphi 0, %s28
      %s48 = sphi 0, %s48
      %s50 = sphi 0, %s48
      %s51 = sphi 0, %s50
      %s65 = sphi 0, %s51
      %s71 = sphi 0, %s73
      %s74 = sphi 0, %s71
      %s75 = sphi 0, %s74
      %s91 = sphi 0, %s75
    $region4: #{tpu_custom_call.1} parent=1 // loop_header_branch
      %17 = sbr.rel (%p15) target = $region8
    $region5: #{tpu_custom_call.1} parent=1 // loop_body
      %s19 = ssub.s32 %s14, 1
      %s20 = ssub.s32 %s14, 2
      %s21 = sadd.s32 %s14, 1
      %s22 = ssub.s32 %s14, %s21
      %p23 = scmp.eq.s32.totalorder %s22, 0
      %s25 = sadd.s32 %s24, 1
      %s26 = scalar_select %p23, %s24, %s25
      %p29 = pneg %p23
      %p30 = scmp.eq.s32.totalorder %s14, 1
      %p31 = por %p29, %p30
      %p32 = scmp.ne.s32.totalorder %s24, %s27
      %p33 = scmp.eq.s32.totalorder %s14, 0
      %p34 = por %p32, %p33
      %p35 = scmp.ne.s32.totalorder %s24, %s27
      %p36 = scmp.eq.s32.totalorder %s19, 1
      %p37 = por %p35, %p36
      %p38 = scmp.ne.s32.totalorder %s27, %s28
      %p39 = scmp.eq.s32.totalorder %s19, 0
      %p40 = por %p38, %p39
      %p41 = scmp.ne.s32.totalorder %s27, %s28
      %p42 = scmp.eq.s32.totalorder %s20, 1
      %p43 = por %p41, %p42
      %p45 = scmp.ne.s32.totalorder %s28, %s44
      %p46 = scmp.eq.s32.totalorder %s20, 0
      %p47 = por %p45, %p46
      %s49 = sadd.s32 %s48, 1
      %p52 = scmp.eq.s32.totalorder %s14, 1
      %p53 = scmp.ne.s32.totalorder %s48, %s50
      %p54 = scmp.eq.s32.totalorder %s14, 0
      %p55 = por %p53, %p54
      %p56 = scmp.ne.s32.totalorder %s48, %s50
      %p57 = scmp.eq.s32.totalorder %s19, 1
      %p58 = por %p56, %p57
      %p59 = scmp.ne.s32.totalorder %s50, %s51
      %p60 = scmp.eq.s32.totalorder %s19, 0
      %p61 = por %p59, %p60
      %p62 = scmp.ne.s32.totalorder %s50, %s51
      %p63 = scmp.eq.s32.totalorder %s20, 1
      %p64 = por %p62, %p63
      %p66 = scmp.ne.s32.totalorder %s51, %s65
      %p67 = scmp.eq.s32.totalorder %s20, 0
      %p68 = por %p66, %p67
      %s69 = ssub.s32 %s14, %s21
      %p70 = scmp.eq.s32.totalorder %s69, 0
      %s72 = sadd.s32 %s71, 1
      %s73 = scalar_select %p70, %s71, %s72
      %p76 = pneg %p70
      %p77 = scmp.eq.s32.totalorder %s14, 1
      %p78 = por %p76, %p77
      %p79 = scmp.ne.s32.totalorder %s71, %s74
      %p80 = scmp.eq.s32.totalorder %s14, 0
      %p81 = por %p79, %p80
      %p82 = scmp.ne.s32.totalorder %s71, %s74
      %p83 = scmp.eq.s32.totalorder %s19, 1
      %p84 = por %p82, %p83
      %p85 = scmp.ne.s32.totalorder %s74, %s75
      %p86 = scmp.eq.s32.totalorder %s19, 0
      %p87 = por %p85, %p86
      %p88 = scmp.ne.s32.totalorder %s74, %s75
      %p89 = scmp.eq.s32.totalorder %s20, 1
      %p90 = por %p88, %p89
      %p92 = scmp.ne.s32.totalorder %s75, %s91
      %p93 = scmp.eq.s32.totalorder %s20, 0
      %p94 = por %p92, %p93
      %p95 = scmp.le.s32.totalorder 1, %s14
      %p96 = scmp.lt.s32.totalorder %s14, 3
      %p97 = pnand %p95, %p96
      %p98 = pneg %p97
      // Predicated region
      $region9: #{tpu_custom_call.1} parent=5 // pred_check
        _
      $region10: #{tpu_custom_call.1} parent=5 // pred_check_branch
        %100 = sbr.rel (%p97) target = $region12
      $region11: #{tpu_custom_call.1} parent=5 // pred_region
        %s101 = ssub.s32 %s14, 1
        // Predicated region
        $region13: #{tpu_custom_call.1} parent=11 // pred_check
          %p102 = pneg %p61
        $region14: #{tpu_custom_call.1} parent=11 // pred_check_branch
          %104 = sbr.rel (%p102) target = $region16
        $region15: #{tpu_custom_call.1} parent=11 // pred_region
          _
        $region16: #{tpu_custom_call.1} parent=11 // pred_fallthru
          _
      $region12: #{tpu_custom_call.1} parent=5 // pred_fallthru
        _
      %p105 = scmp.lt.s32.totalorder %s14, 2
      // Predicated region
      $region17: #{tpu_custom_call.1} parent=5 // pred_check
        %p106 = pneg %p105
      $region18: #{tpu_custom_call.1} parent=5 // pred_check_branch
        %108 = sbr.rel (%p106) target = $region20
      $region19: #{tpu_custom_call.1} parent=5 // pred_region
        // Predicated region
        $region21: #{tpu_custom_call.1} parent=19 // pred_check
          %p109 = pneg %p34
        $region22: #{tpu_custom_call.1} parent=19 // pred_check_branch
          %111 = sbr.rel (%p109) target = $region24
        $region23: #{tpu_custom_call.1} parent=19 // pred_region
          %s112 = sand.u32 %s24, 1
          %s113 = scalar_lea.sflag [#allocation3], %s112
          %s114 = sand.u32 %s24, 1
          %s115 = smul.addr %s114, 4
          %s116 = scalar_lea.vmem [#allocation2], %s115
          %s118 = ssub.s32 64, 64
          %119 = vsyncadd %s113, %s118
          %s120 = smul.addr %s14, 64
          %s121 = scalar_lea.hbm %s0, %s120
          %s123 = sshll.u32 %s116, 4
          %s124 = int_to_ptr.vmem [resolvable:$true] %s123
          %126 = dma.hbm_to_vmem [thread:$0]  %s121, 64, %s124, %s113
        $region24: #{tpu_custom_call.1} parent=19 // pred_fallthru
          _
      $region20: #{tpu_custom_call.1} parent=5 // pred_fallthru
        _
      %p127 = scmp.le.s32.totalorder 1, %s14
      %p128 = scmp.lt.s32.totalorder %s14, 3
      %p129 = pnand %p127, %p128
      %p130 = pneg %p129
      // Predicated region
      $region25: #{tpu_custom_call.1} parent=5 // pred_check
        _
      $region26: #{tpu_custom_call.1} parent=5 // pred_check_branch
        %132 = sbr.rel (%p129) target = $region28
      $region27: #{tpu_custom_call.1} parent=5 // pred_region
        %s133 = ssub.s32 %s14, 1
        %s134 = sand.u32 %s27, 1
        %s135 = scalar_lea.sflag [#allocation3], %s134
        %s136 = sand.u32 %s27, 1
        %s137 = smul.addr %s136, 4
        %s138 = scalar_lea.vmem [#allocation2], %s137
        // Predicated region
        $region29: #{tpu_custom_call.1} parent=27 // pred_check
          %p139 = pneg %p40
        $region30: #{tpu_custom_call.1} parent=27 // pred_check_branch
          %141 = sbr.rel (%p139) target = $region32
        $region31: #{tpu_custom_call.1} parent=27 // pred_region
          %142 = dma.done %s135, 64
        $region32: #{tpu_custom_call.1} parent=27 // pred_fallthru
          _
        %s143 = sand.u32 %s27, 1
        %s144 = scalar_lea.sflag [#allocation3], %s143
        %s145 = sand.u32 %s27, 1
        %s146 = smul.addr %s145, 4
        %s147 = scalar_lea.vmem [#allocation2], %s146
        %p148 = pneg %p40
        %p149 = pneg %p37
        %p150 = pneg %p61
        %p151 = pneg %p58
        %p152 = pneg %p87
        %p153 = pneg %p84
        %s154 = sand.u32 %s74, 1
        %s155 = scalar_lea.sflag [#allocation4], %s154
        %s156 = sand.u32 %s74, 1
        %s157 = smul.addr %s156, 4
        %s158 = scalar_lea.vmem [#allocation5], %s157
        %v159 = vld [vmem:[%s138] sm:$0xf]
        %v160 = vunpack.c.l.bf16 %v159
        %v161 = vmul.f32 %v160, %v160
        %162 = vadd.xlane.f32.xlu0 %v161
        %v163 = vpop.xlane.xlu0 %162
        %v164 = vmul.f32 %v163, 0.0078125
        %v165 = vadd.f32 %v164, 1e-06
        %v166 = vrsqrt.pop %v165
        %v167 = vmul.f32 %v160, %v166
        %v168 = vpack.c.bf16 %v167, %v167
        %v169 = vld [vmem:[%s1] sm:$0x1]
        %v171 = vpack.i.b16 %v169, %v169
        %v173 = vlaneseq
        %v174 = vshrl.u32 %v173, 7
        %v175 = vsub.s32 0, %v174
        %v176 = vrot.slane %v171, %v175
        %v177 = vmul.bf16 %v168, %v176
        %178 = vst [vmem:[%s158] sm:$0xf] %v177
        %s179 = sand.u32 %s74, 1
        %s180 = scalar_lea.sflag [#allocation4], %s179
        %s181 = sand.u32 %s74, 1
        %s182 = smul.addr %s181, 4
        %s183 = scalar_lea.vmem [#allocation5], %s182
        // Predicated region
        $region33: #{tpu_custom_call.1} parent=27 // pred_check
          %p184 = pneg %p84
        $region34: #{tpu_custom_call.1} parent=27 // pred_check_branch
          %186 = sbr.rel (%p184) target = $region36
        $region35: #{tpu_custom_call.1} parent=27 // pred_region
          %s188 = ssub.s32 64, 64
          %189 = vsyncadd %s180, %s188
          %s190 = smul.addr %s19, 64
          %s191 = scalar_lea.hbm %s2, %s190
          %s193 = sshll.u32 %s183, 4
          %s194 = int_to_ptr.vmem [resolvable:$true] %s193
          %196 = dma.vmem_to_hbm [thread:$0]  %s194, 64, %s191, %s180
        $region36: #{tpu_custom_call.1} parent=27 // pred_fallthru
          _
      $region28: #{tpu_custom_call.1} parent=5 // pred_fallthru
        _
      %p197 = scmp.le.s32.totalorder 2, %s14
      // Predicated region
      $region37: #{tpu_custom_call.1} parent=5 // pred_check
        %p198 = pneg %p197
      $region38: #{tpu_custom_call.1} parent=5 // pred_check_branch
        %200 = sbr.rel (%p198) target = $region40
      $region39: #{tpu_custom_call.1} parent=5 // pred_region
        %s201 = ssub.s32 %s14, 2
        // Predicated region
        $region41: #{tpu_custom_call.1} parent=39 // pred_check
          %p202 = pneg %p90
        $region42: #{tpu_custom_call.1} parent=39 // pred_check_branch
          %204 = sbr.rel (%p202) target = $region44
        $region43: #{tpu_custom_call.1} parent=39 // pred_region
          %s205 = sand.u32 %s75, 1
          %s206 = scalar_lea.sflag [#allocation4], %s205
          %s207 = sand.u32 %s75, 1
          %s208 = smul.addr %s207, 4
          %s209 = scalar_lea.vmem [#allocation5], %s208
          %210 = dma.done %s206, 64
        $region44: #{tpu_custom_call.1} parent=39 // pred_fallthru
          _
      $region40: #{tpu_custom_call.1} parent=5 // pred_fallthru
        _
    $region6: #{tpu_custom_call.1} parent=1 // loop_footer
      %s18 = sadd.s32 1, %s14
    $region7: #{tpu_custom_call.1} parent=1 // loop_footer_branch
      %13 = sbr.rel target = $region3
    $region8: #{tpu_custom_call.1} parent=1 // loop_exit
      _
    %211 = vsyncpa [#allocation3], 1
    %s212 = scalar_lea.sflag [#allocation3], 1
    %213 = vsyncpa %s212, 1
    %214 = vsyncpa [#allocation4], 1
    %s215 = scalar_lea.sflag [#allocation4], 1
    %216 = vsyncpa %s215, 1

</llo_original>
